<compile_context>
chip_gen: v7x
topology: tpu7x:2x2x1
jax: 0.10.0
libtpu: 0.0.40
codegen_flags: <defaults>
</compile_context>

<pallas_src>
import jax
import jax.numpy as jnp
from jax import lax
from jax.experimental import pallas as pl
from jax.experimental.pallas import tpu as pltpu

EPS = 1e-5   # default eps of nn.LayerNorm and nn.BatchNorm1d
_LANE = 128


# --------------------------------------------------------------------------
# Kernel factories (specialized at trace time on real vs. padded channels).
# --------------------------------------------------------------------------

def _make_ln_kernel(c_valid, c_block):
    """out = LayerNorm(x) over the channel (last) dim, per row."""
    masked = c_valid != c_block
    inv_c = 1.0 / float(c_valid)

    def kernel(x_ref, g_ref, b_ref, o_ref):
        x = x_ref[...].astype(jnp.float32)
        mu = jnp.sum(x, axis=-1, keepdims=True) * inv_c     # pads are 0
        xc = x - mu
        if masked:
            lane = lax.broadcasted_iota(jnp.int32, x.shape, x.ndim - 1)
            xc_v = jnp.where(lane < c_valid, xc, 0.0)
        else:
            xc_v = xc
        var = jnp.sum(xc_v * xc_v, axis=-1, keepdims=True) * inv_c
        y = xc * lax.rsqrt(var + EPS) * g_ref[...] + b_ref[...]
        o_ref[...] = y.astype(o_ref.dtype)

    return kernel


def _make_blend_kernel(c_valid, c_block):
    """out = lamda*LN(x) + (1-lamda)*RepBN(x), with all per-channel constants
    folded in the wrapper:
        g = lamda*gamma_ln
        s = (1-lamda)*(gamma_bn*rsqrt(bvar+eps) + alpha)
        b = lamda*beta_ln + (1-lamda)*(beta_bn - bmu*gamma_bn*rsqrt(bvar+eps))
    so the kernel computes  xhat*g + x*s + b  (single combined bias)."""
    masked = c_valid != c_block
    inv_c = 1.0 / float(c_valid)

    def kernel(x_ref, g_ref, s_ref, b_ref, o_ref):
        x = x_ref[...].astype(jnp.float32)
        mu = jnp.sum(x, axis=-1, keepdims=True) * inv_c
        xc = x - mu
        if masked:
            lane = lax.broadcasted_iota(jnp.int32, x.shape, x.ndim - 1)
            xc_v = jnp.where(lane < c_valid, xc, 0.0)
        else:
            xc_v = xc
        var = jnp.sum(xc_v * xc_v, axis=-1, keepdims=True) * inv_c
        y = xc * lax.rsqrt(var + EPS) * g_ref[...] + x * s_ref[...] + b_ref[...]
        o_ref[...] = y.astype(o_ref.dtype)

    return kernel


# --------------------------------------------------------------------------
# VMEM budget / tile sizing (generation- and dtype-aware).
# --------------------------------------------------------------------------

def _vmem_budget():
    """Returns (vmem_limit_bytes, tile_budget_bytes)."""
    try:
        cap = int(pltpu.get_tpu_info().vmem_capacity_bytes)
    except Exception:
        cap = 64 << 20   # v7x physical VMEM — the smallest of any generation
    # Explicit scoped limit: ~48 MiB on v7x (64 MiB physical), ~96 MiB on
    # v5e/v6e (128 MiB physical).  Never rely on the 16/32 MiB defaults.
    vmem_limit = min((cap * 3) // 4, 96 << 20)
    # Leave ~1/3 headroom inside the limit for params, semaphores, scratch.
    tile_budget = (vmem_limit * 2) // 3
    return vmem_limit, tile_budget


def _pick_row_tile(R, C, dtype, tile_budget):
    itemsize = jnp.dtype(dtype).itemsize
    sub = {1: 32, 2: 16, 4: 8}.get(itemsize, 8)   # dtype sublane multiple
    # Live bytes per tiled row: double-buffered input + output at native
    # itemsize (4 tiles) plus ~2 f32-tile equivalents for upcast temporaries.
    bytes_per_row = C * (4 * itemsize + 2 * 4)
    max_rows = max(sub, tile_budget // bytes_per_row)
    tr = min(R, max_rows)
    if tr < R:
        if tr >= 512:
            tr = (tr // 512) * 512          # avoid a tiny tail grid step
        else:
            tr = max(sub, (tr // sub) * sub)
        # Keep >= ~8 grid steps (v7x megacore balance) while tiles stay big.
        while tr >= 1024 and pl.cdiv(R, tr) < 8:
            tr = max(sub, ((tr // 2) // sub) * sub)
    return tr


def _padded_channels(C):
    """Pad C to a multiple of 128 only when the extra bytes are modest."""
    Cp = ((C + _LANE - 1) // _LANE) * _LANE
    if Cp != C and Cp <= (C * 3) // 2:
        return Cp
    # TODO(synk): for tiny C (e.g. 32) a lane-dense layout would need a
    # row-grouped (R//g, g*C) view with segmented LN stats; not implemented.
    return C


# --------------------------------------------------------------------------
# Row-tiled pallas_call wrapper.
# --------------------------------------------------------------------------

def _row_tiled_call(kernel_factory, x2d, params):
    R, C = x2d.shape
    Cp = _padded_channels(C)
    if Cp != C:
        x2d = jnp.pad(x2d, ((0, 0), (0, Cp - C)))
        params = [jnp.pad(p, ((0, 0), (0, Cp - C))) for p in params]

    vmem_limit, tile_budget = _vmem_budget()
    tr = _pick_row_tile(R, Cp, x2d.dtype, tile_budget)
    kernel = kernel_factory(C, Cp)

    xspec = pl.BlockSpec((tr, Cp), lambda i: (i, 0))     # row-tiled
    pspec = pl.BlockSpec((1, Cp), lambda i: (0, 0))      # broadcast params

    out = pl.pallas_call(
        kernel,
        out_shape=jax.ShapeDtypeStruct((R, Cp), x2d.dtype),
        grid=(pl.cdiv(R, tr),),
        in_specs=[xspec] + [pspec] * len(params),
        out_specs=xspec,
        compiler_params=pltpu.CompilerParams(
            # Row tiles are independent (BN stats hoisted) -> megacore-shardable.
            dimension_semantics=("parallel",),
            vmem_limit_bytes=vmem_limit,
        ),
    )(x2d, *params)

    if Cp != C:
        out = out[:, :C]
    return out


# --------------------------------------------------------------------------
# Module wrapper (mirrors the PyTorch LinearNorm forward semantics).
# --------------------------------------------------------------------------

class LinearNorm:
    """JAX/Pallas re-implementation of ultralytics LinearNorm(dim, LayerNorm, RepBN)."""

    def __init__(self, dim, warm=0, step=300000, r0=1.0):
        self.warm = int(warm)
        self.iter = int(step)
        self.total_step = int(step)
        self.r0 = float(r0)
        self.training = True
        # norm1 = LayerNorm(dim): weight=1, bias=0
        self.ln_gamma = jnp.ones((1, dim), jnp.float32)
        self.ln_beta = jnp.zeros((1, dim), jnp.float32)
        # norm2 = RepBN(dim): BatchNorm1d(dim) (weight=1, bias=0,
        # running_mean=0, running_var=1) and alpha = 1
        self.bn_gamma = jnp.ones((1, dim), jnp.float32)
        self.bn_beta = jnp.zeros((1, dim), jnp.float32)
        self.bn_rmean = jnp.zeros((1, dim), jnp.float32)
        self.bn_rvar = jnp.ones((1, dim), jnp.float32)
        self.alpha = 1.0
        # TODO(synk): BatchNorm1d running-stat updates during training are a
        # side effect that does not affect the forward output; not replicated.
        # TODO(synk): warm/iter are Python-side state; under jit/scan this
        # per-step schedule freezes to a trace-time constant.

    def __call__(self, x):
        B, N, C = x.shape
        x2d = x.reshape(B * N, C)

        if self.training:
            if self.warm > 0:
                # warm phase: x = norm1(x) only (pure LayerNorm kernel).
                self.warm -= 1
                out = _row_tiled_call(_make_ln_kernel, x2d,
                                      [self.ln_gamma, self.ln_beta])
            else:
                lamda = self.r0 * self.iter / self.total_step
                if self.iter > 0:
                    self.iter -= 1
                # Single-pass BN batch statistics in f32 (one HBM read of x):
                #   bvar = E[x^2] - E[x]^2
                xf = x2d.astype(jnp.float32)
                R = xf.shape[0]
                bsum = jnp.sum(xf, axis=0, keepdims=True)
                bsq = jnp.sum(xf * xf, axis=0, keepdims=True)
                bmu = bsum * (1.0 / R)
                bvar = jnp.maximum(bsq * (1.0 / R) - bmu * bmu, 0.0)
                # Fold BN normalize + alpha*x + (1-lamda) into a per-channel
                # affine, fold lamda into the LN affine, and combine the two
                # biases into one.
                s = self.bn_gamma * lax.rsqrt(bvar + EPS)
                t = self.bn_beta - bmu * s
                s2 = (1.0 - lamda) * (s + self.alpha)
                g1 = lamda * self.ln_gamma
                b1 = lamda * self.ln_beta + (1.0 - lamda) * t   # combined bias
                out = _row_tiled_call(_make_blend_kernel, x2d, [g1, s2, b1])
        else:
            # eval: x = norm2(x) = BN(running stats) + alpha*x — a pure
            # per-channel affine.  Plain JAX so XLA fuses it with neighbours;
            # a pallas_call here would only add an extra HBM read+write.
            s = self.bn_gamma * lax.rsqrt(self.bn_rvar + EPS)
            t = self.bn_beta - self.bn_rmean * s
            out = (x2d.astype(jnp.float32) * (s + self.alpha) + t).astype(x.dtype)

        return out.reshape(B, N, C)


# --------------------------------------------------------------------------
# Pure-JAX reference of the same forward (for correctness checks).
# --------------------------------------------------------------------------

def _reference(x, m, lamda, use_batch):
    B, N, C = x.shape
    x2d = x.reshape(B * N, C).astype(jnp.float32)
    mu = jnp.mean(x2d, axis=-1, keepdims=True)
    var = jnp.mean((x2d - mu) ** 2, axis=-1, keepdims=True)
    ln = (x2d - mu) / jnp.sqrt(var + EPS) * m.ln_gamma + m.ln_beta
    if use_batch:
        bmu = jnp.mean(x2d, axis=0, keepdims=True)
        bvar = jnp.mean((x2d - bmu) ** 2, axis=0, keepdims=True)
    else:
        bmu, bvar = m.bn_rmean, m.bn_rvar
    bn = (x2d - bmu) / jnp.sqrt(bvar + EPS) * m.bn_gamma + m.bn_beta
    repbn = bn + m.alpha * x2d
    return (lamda * ln + (1.0 - lamda) * repbn).reshape(B, N, C)


if __name__ == "__main__":
    key = jax.random.PRNGKey(0)
    B, N, C = 2, 8, 32
    x = jax.random.normal(key, (B, N, C), dtype=jnp.float32)

    # --- warm phase (training, warm > 0): pure LayerNorm kernel ---
    mod_warm = LinearNorm(C, warm=1, step=300000, r0=1.0)
    mod_warm.training = True
    out_warm = mod_warm(x)
    jax.block_until_ready(out_warm)
    ref_warm = _reference(x, mod_warm, 1.0, use_batch=True)   # (1-lamda) term is 0
    assert jnp.allclose(out_warm, ref_warm, atol=1e-4, rtol=1e-4)

    # --- training (warm exhausted): blended LN / RepBN, batch stats ---
    mod = LinearNorm(C, warm=0, step=300000, r0=1.0)
    mod.training = True
    mod.iter = mod.total_step // 2            # mid-training: lamda = 0.5
    lamda_used = mod.r0 * mod.iter / mod.total_step
    out_train = mod(x)
    jax.block_until_ready(out_train)
    ref_train = _reference(x, mod, lamda_used, use_batch=True)
    assert jnp.allclose(out_train, ref_train, atol=1e-4, rtol=1e-4)

    # --- eval: RepBN with running stats (plain-JAX per-channel affine) ---
    mod.training = False
    out_eval = mod(x)
    jax.block_until_ready(out_eval)
    ref_eval = _reference(x, mod, 0.0, use_batch=False)
    assert jnp.allclose(out_eval, ref_eval, atol=1e-4, rtol=1e-4)

    # --- lane-dense padded path: C=192 pads to 256 inside the wrapper ---
    C2 = 192
    x2 = jax.random.normal(jax.random.PRNGKey(1), (B, N, C2), dtype=jnp.float32)
    mod2 = LinearNorm(C2, warm=0, step=300000, r0=1.0)
    mod2.training = True
    mod2.iter = mod2.total_step // 4           # lamda = 0.25
    lamda2 = mod2.r0 * mod2.iter / mod2.total_step
    out2 = mod2(x2)
    jax.block_until_ready(out2)
    ref2 = _reference(x2, mod2, lamda2, use_batch=True)
    assert jnp.allclose(out2, ref2, atol=1e-4, rtol=1e-4)

    print("KERNEL_OK")
</pallas_src>

<mosaic_0001>
module attributes {stable_mosaic.version = 11 : i64} {
  func.func @kernel(%arg0: i32, %arg1: memref<16x32xf32, #tpu.memory_space<vmem>>, %arg2: memref<1x32xf32, #tpu.memory_space<vmem>>, %arg3: memref<1x32xf32, #tpu.memory_space<vmem>>, %arg4: memref<16x32xf32, #tpu.memory_space<vmem>>) attributes {dimension_semantics = [#tpu.dimension_semantics<parallel>], iteration_bounds = array<i64: 1>, scalar_prefetch = 0 : i64, scratch_operands = 0 : i64, tpu.core_type = #tpu.core_type<tc>, window_params = [{transform_indices = @transform_0, window_bounds = array<i64: 16, 32>}, {pipeline_mode = #tpu.pipeline_mode<synchronous>, transform_indices = @transform_1, window_bounds = array<i64: 1, 32>}, {pipeline_mode = #tpu.pipeline_mode<synchronous>, transform_indices = @transform_2, window_bounds = array<i64: 1, 32>}, {transform_indices = @transform_3, window_bounds = array<i64: 16, 32>}]} {
    %c0 = arith.constant 0 : index
    %c0_0 = arith.constant 0 : index
    %0 = vector.load %arg1[%c0, %c0_0] : memref<16x32xf32, #tpu.memory_space<vmem>>, vector<16x32xf32>
    %cst = arith.constant dense<0.000000e+00> : vector<16xf32>
    %1 = vector.multi_reduction <add>, %0, %cst [1] : vector<16x32xf32> to vector<16xf32>
    %2 = vector.shape_cast %1 : vector<16xf32> to vector<16x1xf32>
    %cst_1 = arith.constant 3.125000e-02 : f32
    %3 = vector.broadcast %cst_1 : f32 to vector<16x1xf32>
    %4 = arith.mulf %2, %3 : vector<16x1xf32>
    %5 = vector.broadcast %4 : vector<16x1xf32> to vector<16x32xf32>
    %6 = arith.subf %0, %5 : vector<16x32xf32>
    %7 = arith.mulf %6, %6 : vector<16x32xf32>
    %cst_2 = arith.constant dense<0.000000e+00> : vector<16xf32>
    %8 = vector.multi_reduction <add>, %7, %cst_2 [1] : vector<16x32xf32> to vector<16xf32>
    %9 = vector.shape_cast %8 : vector<16xf32> to vector<16x1xf32>
    %cst_3 = arith.constant 3.125000e-02 : f32
    %10 = vector.broadcast %cst_3 : f32 to vector<16x1xf32>
    %11 = arith.mulf %9, %10 : vector<16x1xf32>
    %cst_4 = arith.constant 9.99999974E-6 : f32
    %12 = vector.broadcast %cst_4 : f32 to vector<16x1xf32>
    %13 = arith.addf %11, %12 : vector<16x1xf32>
    %14 = math.rsqrt %13 : vector<16x1xf32>
    %15 = vector.broadcast %14 : vector<16x1xf32> to vector<16x32xf32>
    %16 = arith.mulf %6, %15 : vector<16x32xf32>
    %c0_5 = arith.constant 0 : index
    %c0_6 = arith.constant 0 : index
    %17 = vector.load %arg2[%c0_5, %c0_6] : memref<1x32xf32, #tpu.memory_space<vmem>>, vector<1x32xf32>
    %18 = vector.broadcast %17 : vector<1x32xf32> to vector<16x32xf32>
    %19 = arith.mulf %16, %18 : vector<16x32xf32>
    %c0_7 = arith.constant 0 : index
    %c0_8 = arith.constant 0 : index
    %20 = vector.load %arg3[%c0_7, %c0_8] : memref<1x32xf32, #tpu.memory_space<vmem>>, vector<1x32xf32>
    %21 = vector.broadcast %20 : vector<1x32xf32> to vector<16x32xf32>
    %22 = arith.addf %19, %21 : vector<16x32xf32>
    %c0_9 = arith.constant 0 : index
    %c0_10 = arith.constant 0 : index
    %23 = vector.load %arg4[%c0_9, %c0_10] : memref<16x32xf32, #tpu.memory_space<vmem>>, vector<16x32xf32>
    tpu.vector_store %arg4[%c0_9, %c0_10], %22 {strides = array<i32>} : memref<16x32xf32, #tpu.memory_space<vmem>>, vector<16x32xf32>,
    return
  }
  func.func @transform_0(%arg0: i32) -> (i32, i32) {
    %c0_i32 = arith.constant 0 : i32
    %c0_i32_0 = arith.constant 0 : i32
    return %arg0, %c0_i32 : i32, i32
  }
  func.func @transform_1(%arg0: i32) -> (i32, i32) {
    %c0_i32 = arith.constant 0 : i32
    %c0_i32_0 = arith.constant 0 : i32
    %c0_i32_1 = arith.constant 0 : i32
    return %c0_i32, %c0_i32_0 : i32, i32
  }
  func.func @transform_2(%arg0: i32) -> (i32, i32) {
    %c0_i32 = arith.constant 0 : i32
    %c0_i32_0 = arith.constant 0 : i32
    %c0_i32_1 = arith.constant 0 : i32
    return %c0_i32, %c0_i32_0 : i32, i32
  }
  func.func @transform_3(%arg0: i32) -> (i32, i32) {
    %c0_i32 = arith.constant 0 : i32
    %c0_i32_0 = arith.constant 0 : i32
    return %arg0, %c0_i32 : i32, i32
  }
}

</mosaic_0001>

<llo_original>
// kernel: tpu_custom_call.1
$region0: #{tpu_custom_call.1}
  #allocation0 [shape = 'u32[]', space=smem, size = 0x4, offset = 0x4, fixed_abs, tag = 'smem constant byte address 0x4 - core index']
  #allocation1 [shape = 'u32[144,128]{1,0:T(1,128)}', space=vmem, size = 0x12000, scoped, tag = 'internal scratch']
  %s0 = inlined_call_operand.hbm [shape: f32[16,32], index: 0, kind: input, shape index: {}]
  %s1 = inlined_call_operand.vmem [shape: f32[1,32], index: 1, kind: input, shape index: {}]
  %s2 = inlined_call_operand.vmem [shape: f32[1,32], index: 2, kind: input, shape index: {}]
  %s3 = inlined_call_operand.hbm [shape: f32[16,32], index: 3, kind: output, shape index: {}]
  %s4 = sld [smem:[#allocation0]]
  $region26: #{tpu_custom_call.1} parent=0
    _
  %s6 = ssub.s32 1, %s4
  %s7 = scalar_select 0, %s6, %s4
  $region1: #{tpu_custom_call.1} parent=0
    #allocation2 [shape = 'u8[8192]{0}', space=vmem, size = 0x2000, scoped, tag = 'input window, operand 0, single buffered']
    #allocation3 [shape = 's32[1]{0}', space=sflag, size = 0x4, scoped, tag = 'scoped memory for tpu_custom_call.1']
    #allocation4 [shape = 's32[1]{0}', space=sflag, size = 0x4, scoped, tag = 'scoped memory for tpu_custom_call.1']
    #allocation5 [shape = 'u8[8192]{0}', space=vmem, size = 0x2000, scoped, tag = 'output window, operand 0, single buffered']
    %8 = vsyncpa [#allocation3], 0
    %9 = vsyncpa [#allocation4], 0
    // Predicated region
    $region2: #{tpu_custom_call.1} parent=1 // pred_check
      _
    $region3: #{tpu_custom_call.1} parent=1 // pred_check_branch
      %11 = sbr.rel (0) target = $region5
    $region4: #{tpu_custom_call.1} parent=1 // pred_region
      %s13 = ssub.s32 256, 256
      %14 = vsyncadd [#allocation3], %s13
      %s15 = sshll.u32 [#allocation2], 4
      %s16 = int_to_ptr.vmem [resolvable:$true] %s15
      %21 = dma.hbm_to_vmem [thread:$0]  %s0, 256, %s16, [#allocation3], 128, 128, 8
    $region5: #{tpu_custom_call.1} parent=1 // pred_fallthru
      _
    // Predicated region
    $region6: #{tpu_custom_call.1} parent=1 // pred_check
      _
    $region7: #{tpu_custom_call.1} parent=1 // pred_check_branch
      %23 = sbr.rel (0) target = $region9
    $region8: #{tpu_custom_call.1} parent=1 // pred_region
      _
    $region9: #{tpu_custom_call.1} parent=1 // pred_fallthru
      _
    // Predicated region
    $region10: #{tpu_custom_call.1} parent=1 // pred_check
      _
    $region11: #{tpu_custom_call.1} parent=1 // pred_check_branch
      %25 = sbr.rel (0) target = $region13
    $region12: #{tpu_custom_call.1} parent=1 // pred_region
      _
    $region13: #{tpu_custom_call.1} parent=1 // pred_fallthru
      _
    // Predicated region
    $region14: #{tpu_custom_call.1} parent=1 // pred_check
      _
    $region15: #{tpu_custom_call.1} parent=1 // pred_check_branch
      %27 = sbr.rel (0) target = $region17
    $region16: #{tpu_custom_call.1} parent=1 // pred_region
      %28 = dma.done [#allocation3], 256
    $region17: #{tpu_custom_call.1} parent=1 // pred_fallthru
      _
    %v29 = vld [vmem:[#allocation2] sm:$0xff]
    %v30 = vld [vmem:[#allocation2 + $0x8] sm:$0xff]
    %vm31 = vcmask 261120
    %v32 = vsel %vm31, %v29, 0.0
    %33 = vadd.xlane.f32.xlu0 %v32
    %v34 = vpop.xlane.xlu0 %33
    %v35 = vsel %vm31, %v30, 0.0
    %36 = vadd.xlane.f32.xlu0 %v35
    %v37 = vpop.xlane.xlu0 %36
    %v38 = vmul.f32 %v34, 0.03125
    %v39 = vmul.f32 %v37, 0.03125
    %v40 = vsub.f32 %v29, %v38
    %v41 = vsub.f32 %v30, %v39
    %v42 = vmul.f32 %v40, %v40
    %v43 = vmul.f32 %v41, %v41
    %v44 = vsel %vm31, %v42, 0.0
    %45 = vadd.xlane.f32.xlu0 %v44
    %v46 = vpop.xlane.xlu0 %45
    %v47 = vsel %vm31, %v43, 0.0
    %48 = vadd.xlane.f32.xlu0 %v47
    %v49 = vpop.xlane.xlu0 %48
    %v50 = vmul.f32 %v46, 0.03125
    %v51 = vmul.f32 %v49, 0.03125
    %v52 = vadd.f32 %v50, 1e-05
    %v53 = vadd.f32 %v51, 1e-05
    %v54 = vrsqrt.pop %v52
    %v55 = vrsqrt.pop %v53
    %v56 = vmul.f32 %v40, %v54
    %v57 = vmul.f32 %v41, %v55
    %v58 = vld [vmem:[%s1] sm:$0x1]
    %v60 = vlaneseq
    %v61 = vshrl.u32 %v60, 7
    %v62 = vsub.s32 0, %v61
    %v63 = vrot.slane %v58, %v62
    %v65 = vmul.f32 %v56, %v63
    %v66 = vmul.f32 %v57, %v63
    %v67 = vld [vmem:[%s2] sm:$0x1]
    %v69 = vlaneseq
    %v70 = vshrl.u32 %v69, 7
    %v71 = vsub.s32 0, %v70
    %v72 = vrot.slane %v67, %v71
    %v74 = vadd.f32 %v65, %v72
    %v75 = vadd.f32 %v66, %v72
    %76 = vst.msk [vmem:[#allocation5] sm:$0xff] %vm31, %v74
    %77 = vst.msk [vmem:[#allocation5 + $0x8] sm:$0xff] %vm31, %v75
    // Predicated region
    $region18: #{tpu_custom_call.1} parent=1 // pred_check
      _
    $region19: #{tpu_custom_call.1} parent=1 // pred_check_branch
      %79 = sbr.rel (0) target = $region21
    $region20: #{tpu_custom_call.1} parent=1 // pred_region
      %s81 = ssub.s32 256, 256
      %82 = vsyncadd [#allocation4], %s81
      %s83 = sshll.u32 [#allocation5], 4
      %s84 = int_to_ptr.vmem [resolvable:$true] %s83
      %89 = dma.vmem_to_hbm [thread:$0]  %s84, 256, %s3, [#allocation4], 128, 128, 8
    $region21: #{tpu_custom_call.1} parent=1 // pred_fallthru
      _
    // Predicated region
    $region22: #{tpu_custom_call.1} parent=1 // pred_check
      _
    $region23: #{tpu_custom_call.1} parent=1 // pred_check_branch
      %91 = sbr.rel (0) target = $region25
    $region24: #{tpu_custom_call.1} parent=1 // pred_region
      %92 = dma.done [#allocation4], 256
    $region25: #{tpu_custom_call.1} parent=1 // pred_fallthru
      _
    %93 = vsyncpa [#allocation3], 1
    %94 = vsyncpa [#allocation4], 1

</llo_original>
